<compile_context>
chip_gen: v6e
topology: v6e:2x2x1
jax: 0.10.0
libtpu: 0.0.40
codegen_flags: <defaults>
</compile_context>

<pallas_src>
import jax
import jax.numpy as jnp
from jax.experimental import pallas as pl
from jax.experimental.pallas import tpu as pltpu


def _round_up(x, m):
    return ((x + m - 1) // m) * m


def _single_buffer_spec(block_shape, index_map):
    """BlockSpec for a grid-invariant operand: one resident buffer, not two."""
    try:
        return pl.BlockSpec(block_shape, index_map, pipeline_mode=pl.Buffered(1))
    except Exception:  # pragma: no cover - jax without pipeline_mode support
        return pl.BlockSpec(block_shape, index_map)


def _vmem_capacity_bytes():
    try:
        return int(pltpu.get_tpu_info().vmem_capacity_bytes)
    except Exception:  # pragma: no cover
        return 64 * 1024 * 1024   # v7x-conservative fallback


def _pick_vocab_tile(vp, cap=2048):
    vt = min(vp, cap)
    while vp % vt != 0:
        vt -= 128
    return vt


def _kernel_b_vmem_bytes(rt, hp, vt, nvb, mxu_bytes):
    wbuf = 1 if nvb == 1 else 2               # Wo / bo buffer count
    return (2 * rt * hp * mxu_bytes           # hidden-row blocks (double buffered)
            + 2 * rt * 128 * 4                # int32 targets (lane-padded)
            + wbuf * hp * vt * mxu_bytes      # Wo tile
            + wbuf * 8 * vt * 4               # bo tile (sublane-padded)
            + 2 * rt * vt * 4                 # f32 logits block (double buffered)
            + 2 * 8 * 128 * 4                 # partial-loss block
            + 3 * rt * 128 * 4)               # online-softmax scratch (m, s, picked)


def _pick_row_tile(n_rows, hp, vt, nvb, mxu_bytes, budget_bytes):
    # Largest row tile that (a) divides the row count, (b) keeps >=2 row blocks
    # so dimension_semantics=("parallel", ...) can split across v7x's two
    # TensorCores, (c) fits the per-generation VMEM budget (cap 256).
    for rt in (256, 128, 64, 32, 16, 8):
        if n_rows % rt:
            continue
        if n_rows >= 16 and n_rows // rt < 2:
            continue
        if _kernel_b_vmem_bytes(rt, hp, vt, nvb, mxu_bytes) <= budget_bytes:
            return rt
    return 8


# ---------------------------------------------------------------------------
# Kernel A: serial recurrence  h_t = tanh(xpre_t + h_{t-1} @ Wh)
# ---------------------------------------------------------------------------
def rnn_recurrence_kernel(xpre_ref, wh_ref, hout_ref, h_ref):
    # New batch block -> reset the carried hidden state (cell.init() == zeros).
    @pl.when(pl.program_id(1) == 0)
    def _():
        h_ref[...] = jnp.zeros_like(h_ref)

    wh = wh_ref[...]                 # bf16 weights, grid-invariant, single-buffered
    h = h_ref[...]                   # f32 carried hidden state
    tc = xpre_ref.shape[0]
    # Tc timesteps fused per grid step; fully unrolled at trace time so the
    # carried hidden state stays in vregs across the chunk.  Only the dot
    # inputs are cast to bf16; the add / tanh / carry stay f32.
    for t in range(tc):
        h = jnp.tanh(xpre_ref[t] +
                     jnp.dot(h.astype(wh.dtype), wh,
                             preferred_element_type=jnp.float32))
        hout_ref[t] = h.astype(hout_ref.dtype)
    h_ref[...] = h
    # TODO(synk): optionally drive the MXU explicitly (matmul_push_rhs once per
    # chunk) on v5e to avoid re-pushing Wh every step.


# ---------------------------------------------------------------------------
# Kernel B: row-parallel projection + online log-softmax + masked NLL
# ---------------------------------------------------------------------------
def projection_loss_kernel(h_ref, tgt_ref, wo_ref, bo_ref,
                           logits_ref, loss_ref, m_sc, s_sc, picked_sc):
    v = pl.program_id(1)

    @pl.when(v == 0)
    def _():
        m_sc[...] = jnp.full_like(m_sc, -jnp.inf)
        s_sc[...] = jnp.zeros_like(s_sc)
        picked_sc[...] = jnp.zeros_like(picked_sc)

    wo = wo_ref[...]
    logits = jnp.dot(h_ref[...].astype(wo.dtype), wo,
                     preferred_element_type=jnp.float32) + bo_ref[...]
    logits_ref[...] = logits.astype(logits_ref.dtype)

    # Online logsumexp across vocab tiles (padded vocab lanes carry -1e30 from
    # bo, applied in f32 after the matmul, so they underflow to exactly 0).
    m_prev = m_sc[...]
    m_new = jnp.maximum(m_prev, jnp.max(logits, axis=-1, keepdims=True))
    s_sc[...] = (s_sc[...] * jnp.exp(m_prev - m_new) +
                 jnp.sum(jnp.exp(logits - m_new), axis=-1, keepdims=True))
    m_sc[...] = m_new
    # TODO(synk): on v6e/v7x the exp could run in bf16 on the EUP for ~2x
    # transcendental throughput (keep f32 on v5e).

    # Pick the target logit with an iota compare (no logp tensor, no one-hot).
    tgt = tgt_ref[...]                                       # (Rt, 1), -1 = ignore
    vt = logits.shape[-1]
    ids = v * vt + jax.lax.broadcasted_iota(jnp.int32, logits.shape, 1)
    picked_sc[...] += jnp.sum(jnp.where(ids == tgt, logits, 0.0),
                              axis=-1, keepdims=True)

    @pl.when(v == pl.num_programs(1) - 1)
    def _():
        lse = jnp.log(s_sc[...]) + m_sc[...]
        per_row = jnp.where(tgt >= 0, picked_sc[...] - lse, 0.0)
        # Per-block partial loss replicated across one (8,128) tile so the
        # store is full-width; reduced in glue.
        loss_ref[...] = jnp.broadcast_to(-jnp.sum(per_row), loss_ref.shape)


# ---------------------------------------------------------------------------
# Wrapper
# ---------------------------------------------------------------------------
def rnn_forward(sent, length, wordvec, wx, wh, b, wo, bo, *,
                time_chunk=32, mxu_dtype=jnp.bfloat16,
                logits_dtype=jnp.float32, vocab_tile=2048):
    """sent: (B, T) int32 token ids, length: (B,) int32."""
    B, T = sent.shape
    V, E = wordvec.shape
    H = wh.shape[0]
    nsteps = T - 1

    # Padded sizes: lane-dense hidden/vocab, sublane-aligned batch.
    Hp = _round_up(H, 128)
    Vp = _round_up(V, 128)
    Bp = _round_up(B, 8)
    Tc = min(time_chunk, _round_up(nsteps, 8))    # fused timesteps per grid step
    Tp = _round_up(nsteps, Tc)

    NEG = -1e30   # padded vocab logits underflow to exactly 0 in the softmax
    mxu_bytes = jnp.dtype(mxu_dtype).itemsize

    wx_p = jnp.zeros((E, Hp), jnp.float32).at[:, :H].set(wx)
    b_p = jnp.zeros((Hp,), jnp.float32).at[:H].set(b)
    wh_p = jnp.zeros((Hp, Hp), jnp.float32).at[:H, :H].set(wh).astype(mxu_dtype)
    wo_p = jnp.zeros((Hp, Vp), jnp.float32).at[:H, :V].set(wo).astype(mxu_dtype)
    bo_p = jnp.full((Vp,), NEG, jnp.float32).at[:V].set(bo)

    # ---- glue: embedding gather + hoisted input projection, time-major ----
    # Only the tiny int32 token matrix is transposed; no float xpre transpose.
    sent_t = jnp.swapaxes(sent[:, :nsteps], 0, 1)            # (T-1, B) ids
    emb_t = jnp.take(wordvec, sent_t, axis=0)                # (T-1, B, E)
    xpre = emb_t @ wx_p + b_p                                # (T-1, B, Hp) f32
    xpre = jnp.pad(xpre, ((0, Tp - nsteps), (0, Bp - B), (0, 0)))

    # Batch blocking: split the batch across the megacore-parallel leading grid
    # axis when it halves cleanly (primarily for v7x's two TensorCores; the
    # extra grid steps are negligible on single-core generations).
    Bblk = Bp // 2 if Bp % 16 == 0 else Bp

    # ---- kernel A: serial recurrence, Tc timesteps per grid step ----
    h_all = pl.pallas_call(
        rnn_recurrence_kernel,
        out_shape=jax.ShapeDtypeStruct((Tp, Bp, Hp), mxu_dtype),
        grid_spec=pltpu.PrefetchScalarGridSpec(
            num_scalar_prefetch=0,
            grid=(Bp // Bblk, Tp // Tc),
            in_specs=[
                pl.BlockSpec((Tc, Bblk, Hp), lambda bb, t: (t, bb, 0)),  # xpre
                _single_buffer_spec((Hp, Hp), lambda bb, t: (0, 0)),     # Wh
            ],
            out_specs=pl.BlockSpec((Tc, Bblk, Hp), lambda bb, t: (t, bb, 0)),
            scratch_shapes=[pltpu.VMEM((Bblk, Hp), jnp.float32)],        # carried h
        ),
        compiler_params=pltpu.CompilerParams(
            dimension_semantics=("parallel", "arbitrary")),
    )(xpre, wh_p)

    # ---- glue: batch-major rows (transposes only the small bf16 hidden) ----
    # TODO(synk): Kernel A could write batch-major directly (sublane-strided
    # hout_ref[:, t, :] stores) to drop this transpose; kept in glue until the
    # strided store is measured.
    hs_rows = jnp.swapaxes(h_all[:nsteps], 0, 1).reshape(Bp * nsteps, Hp)

    # int32 target ids; -1 marks masked / padded positions (replaces one-hot).
    tgt_real = jnp.where(jnp.arange(1, T)[None, :] < length[:, None],
                         sent[:, 1:], -1).astype(jnp.int32)             # (B, T-1)
    tgt_full = jnp.full((Bp, nsteps), -1, jnp.int32).at[:B].set(tgt_real)
    tgt_rows = tgt_full.reshape(Bp * nsteps, 1)

    R = Bp * nsteps
    Vt = _pick_vocab_tile(Vp, vocab_tile)
    nvb = Vp // Vt
    vmem_cap = _vmem_capacity_bytes()
    budget = vmem_cap // 3          # headroom for scoped VMEM / compiler scratch
    Rt = _pick_row_tile(R, Hp, Vt, nvb, mxu_bytes, budget)
    nb = R // Rt
    vmem_limit = int(min(vmem_cap * 7 // 8,
                         max(32 * 1024 * 1024,
                             _kernel_b_vmem_bytes(Rt, Hp, Vt, nvb, mxu_bytes)
                             + 8 * 1024 * 1024)))

    if nvb == 1:   # Wo / bo are grid-invariant -> one resident buffer suffices
        wo_spec = _single_buffer_spec((Hp, Vt), lambda r, v: (0, v))
        bo_spec = _single_buffer_spec((1, Vt), lambda r, v: (0, v))
    else:
        wo_spec = pl.BlockSpec((Hp, Vt), lambda r, v: (0, v))
        bo_spec = pl.BlockSpec((1, Vt), lambda r, v: (0, v))

    # ---- kernel B: parallel projection + online log-softmax + masked NLL ----
    # TODO(synk): on v5e, storing logits in bf16 (or a loss-only mode) halves
    # the dominant HBM stream; kept f32 here for parity with the module.
    logits_rows, loss_parts = pl.pallas_call(
        projection_loss_kernel,
        out_shape=(
            jax.ShapeDtypeStruct((R, Vp), logits_dtype),
            jax.ShapeDtypeStruct((nb, 8, 128), jnp.float32),
        ),
        grid_spec=pltpu.PrefetchScalarGridSpec(
            num_scalar_prefetch=0,
            grid=(nb, nvb),
            in_specs=[
                pl.BlockSpec((Rt, Hp), lambda r, v: (r, 0)),   # hidden rows
                pl.BlockSpec((Rt, 1), lambda r, v: (r, 0)),    # target ids
                wo_spec,                                       # Wo tile
                bo_spec,                                       # bo tile
            ],
            out_specs=[
                pl.BlockSpec((Rt, Vt), lambda r, v: (r, v)),        # lane-dense logits
                pl.BlockSpec((1, 8, 128), lambda r, v: (r, 0, 0)),  # partial losses
            ],
            scratch_shapes=[pltpu.VMEM((Rt, 1), jnp.float32)] * 3,  # m, s, picked
        ),
        compiler_params=pltpu.CompilerParams(
            dimension_semantics=("parallel", "arbitrary"),
            vmem_limit_bytes=vmem_limit),
    )(hs_rows, tgt_rows, wo_p, bo_p.reshape(1, Vp))

    loss = loss_parts[:, 0, 0].sum() / length.sum().astype(jnp.float32)
    logits = logits_rows.reshape(Bp, nsteps, Vp)[:B, :, :V]          # (B, T-1, V)
    return loss, logits


def rnn_forward_reference(sent, length, wordvec, wx, wh, b, wo, bo):
    """Pure-JAX reference mirroring the PyTorch forward (f32 throughout)."""
    B, T = sent.shape
    H = wh.shape[0]
    emb = jnp.take(wordvec, sent, axis=0)
    h = jnp.zeros((B, H), jnp.float32)
    logits_steps = []
    for t in range(T - 1):
        h = jnp.tanh(emb[:, t] @ wx + h @ wh + b)
        logits_steps.append(h @ wo + bo)
    logits = jnp.stack(logits_steps, axis=1)                  # (B, T-1, V)
    logp = jax.nn.log_softmax(logits, axis=-1)
    loss = 0.0
    for i in range(B):
        for j in range(1, int(min(int(length[i]), T))):
            loss += -logp[i, j - 1, sent[i, j]]
    loss = loss / length.sum().astype(jnp.float32)
    return loss, logits


if __name__ == "__main__":
    B, T = 2, 8            # batch, seqlen
    E, H, V = 16, 32, 64   # num_embed_units, num_units, num_vocabs

    key = jax.random.PRNGKey(0)
    k_wv, k_wx, k_wh, k_b, k_wo, k_bo, k_sent = jax.random.split(key, 7)

    wordvec = jax.random.normal(k_wv, (V, E), jnp.float32) * 0.1
    wx = jax.random.normal(k_wx, (E, H), jnp.float32) * 0.1
    wh = jax.random.normal(k_wh, (H, H), jnp.float32) * 0.1
    b = jax.random.normal(k_b, (H,), jnp.float32) * 0.1
    wo = jax.random.normal(k_wo, (H, V), jnp.float32) * 0.1
    bo = jax.random.normal(k_bo, (V,), jnp.float32) * 0.1

    sent = jax.random.randint(k_sent, (B, T), 0, V, dtype=jnp.int32)
    length = jnp.array([T, 5], dtype=jnp.int32)    # sent_length

    loss, logits = rnn_forward(sent, length, wordvec, wx, wh, b, wo, bo)
    jax.block_until_ready((loss, logits))

    loss_ref, logits_ref = rnn_forward_reference(
        sent, length, wordvec, wx, wh, b, wo, bo)

    assert logits.shape == (B, T - 1, V)
    # bf16 MXU operands (f32 accumulation) -> tolerance loosened vs pure f32.
    assert jnp.allclose(logits, logits_ref, atol=2e-2, rtol=2e-2)
    assert jnp.allclose(loss, loss_ref, atol=2e-2, rtol=2e-2)

    # TODO(synk): the `inference()` sampling loop (multinomial / top-p decode)
    # is not implemented here; only the training forward pass is kernelized.
    print("KERNEL_OK")
</pallas_src>

<mosaic_0001>
module attributes {stable_mosaic.version = 11 : i64} {
  func.func @rnn_recurrence_kernel(%arg0: i32, %arg1: i32, %arg2: memref<8x8x128xf32, #tpu.memory_space<vmem>>, %arg3: memref<128x128xbf16, #tpu.memory_space<vmem>>, %arg4: memref<8x8x128xbf16, #tpu.memory_space<vmem>>, %arg5: memref<8x128xf32, #tpu.memory_space<vmem>>) attributes {dimension_semantics = [#tpu.dimension_semantics<parallel>, #tpu.dimension_semantics<arbitrary>], iteration_bounds = array<i64: 1, 1>, scalar_prefetch = 0 : i64, scratch_operands = 1 : i64, tpu.core_type = #tpu.core_type<tc>, window_params = [{transform_indices = @transform_0, window_bounds = array<i64: 8, 8, 128>}, {pipeline_mode = #tpu.pipeline_mode<synchronous>, transform_indices = @transform_1, window_bounds = array<i64: 128, 128>}, {transform_indices = @transform_2, window_bounds = array<i64: 8, 8, 128>}]} {
    %c0_i32 = arith.constant 0 : i32
    %0 = arith.cmpi eq, %arg1, %c0_i32 : i32
    %1 = arith.extui %0 : i1 to i32
    %c0_i32_0 = arith.constant 0 : i32
    %2 = arith.cmpi ne, %1, %c0_i32_0 : i32
    scf.if %2 {
      %cst_54 = arith.constant 0.000000e+00 : f32
      %86 = vector.broadcast %cst_54 : f32 to vector<8x128xf32>
      %c0_55 = arith.constant 0 : index
      %c0_56 = arith.constant 0 : index
      %87 = vector.load %arg5[%c0_55, %c0_56] : memref<8x128xf32, #tpu.memory_space<vmem>>, vector<8x128xf32>
      tpu.vector_store %arg5[%c0_55, %c0_56], %86 {strides = array<i32>} : memref<8x128xf32, #tpu.memory_space<vmem>>, vector<8x128xf32>,
    } else {
    }
    %c0 = arith.constant 0 : index
    %c0_1 = arith.constant 0 : index
    %3 = vector.load %arg3[%c0, %c0_1] : memref<128x128xbf16, #tpu.memory_space<vmem>>, vector<128x128xbf16>
    %c0_2 = arith.constant 0 : index
    %c0_3 = arith.constant 0 : index
    %4 = vector.load %arg5[%c0_2, %c0_3] : memref<8x128xf32, #tpu.memory_space<vmem>>, vector<8x128xf32>
    %c0_4 = arith.constant 0 : index
    %c0_5 = arith.constant 0 : index
    %c0_6 = arith.constant 0 : index
    %5 = vector.load %arg2[%c0_4, %c0_5, %c0_6] : memref<8x8x128xf32, #tpu.memory_space<vmem>>, vector<1x8x128xf32>
    %6 = vector.shape_cast %5 : vector<1x8x128xf32> to vector<8x128xf32>
    %7 = arith.truncf %4 : vector<8x128xf32> to vector<8x128xbf16>
    %cst = arith.constant dense<0.000000e+00> : vector<8x128xf32>
    %8 = tpu.matmul %7, %3, %cst {dimension_numbers = #tpu.dot_dimension_numbers<[1], [0], [0], [1], [0, 0, 1, 1], [], []>} : vector<8x128xbf16>, vector<128x128xbf16>, vector<8x128xf32> -> vector<8x128xf32>
    %9 = arith.addf %6, %8 : vector<8x128xf32>
    %10 = math.tanh %9 : vector<8x128xf32>
    %11 = arith.truncf %10 : vector<8x128xf32> to vector<8x128xbf16>
    %c0_7 = arith.constant 0 : index
    %c0_8 = arith.constant 0 : index
    %c0_9 = arith.constant 0 : index
    %12 = vector.load %arg4[%c0_7, %c0_8, %c0_9] : memref<8x8x128xbf16, #tpu.memory_space<vmem>>, vector<1x8x128xbf16>
    %13 = vector.shape_cast %12 : vector<1x8x128xbf16> to vector<8x128xbf16>
    %14 = vector.shape_cast %11 : vector<8x128xbf16> to vector<1x8x128xbf16>
    tpu.vector_store %arg4[%c0_7, %c0_8, %c0_9], %14 {strides = array<i32>} : memref<8x8x128xbf16, #tpu.memory_space<vmem>>, vector<1x8x128xbf16>,
    %c1 = arith.constant 1 : index
    %c0_10 = arith.constant 0 : index
    %c0_11 = arith.constant 0 : index
    %15 = vector.load %arg2[%c1, %c0_10, %c0_11] : memref<8x8x128xf32, #tpu.memory_space<vmem>>, vector<1x8x128xf32>
    %16 = vector.shape_cast %15 : vector<1x8x128xf32> to vector<8x128xf32>
    %17 = arith.truncf %10 : vector<8x128xf32> to vector<8x128xbf16>
    %cst_12 = arith.constant dense<0.000000e+00> : vector<8x128xf32>
    %18 = tpu.matmul %17, %3, %cst_12 {dimension_numbers = #tpu.dot_dimension_numbers<[1], [0], [0], [1], [0, 0, 1, 1], [], []>} : vector<8x128xbf16>, vector<128x128xbf16>, vector<8x128xf32> -> vector<8x128xf32>
    %19 = arith.addf %16, %18 : vector<8x128xf32>
    %20 = math.tanh %19 : vector<8x128xf32>
    %21 = arith.truncf %20 : vector<8x128xf32> to vector<8x128xbf16>
    %c1_13 = arith.constant 1 : index
    %c0_14 = arith.constant 0 : index
    %c0_15 = arith.constant 0 : index
    %22 = vector.load %arg4[%c1_13, %c0_14, %c0_15] : memref<8x8x128xbf16, #tpu.memory_space<vmem>>, vector<1x8x128xbf16>
    %23 = vector.shape_cast %22 : vector<1x8x128xbf16> to vector<8x128xbf16>
    %24 = vector.shape_cast %21 : vector<8x128xbf16> to vector<1x8x128xbf16>
    tpu.vector_store %arg4[%c1_13, %c0_14, %c0_15], %24 {strides = array<i32>} : memref<8x8x128xbf16, #tpu.memory_space<vmem>>, vector<1x8x128xbf16>,
    %c2 = arith.constant 2 : index
    %c0_16 = arith.constant 0 : index
    %c0_17 = arith.constant 0 : index
    %25 = vector.load %arg2[%c2, %c0_16, %c0_17] : memref<8x8x128xf32, #tpu.memory_space<vmem>>, vector<1x8x128xf32>
    %26 = vector.shape_cast %25 : vector<1x8x128xf32> to vector<8x128xf32>
    %27 = arith.truncf %20 : vector<8x128xf32> to vector<8x128xbf16>
    %cst_18 = arith.constant dense<0.000000e+00> : vector<8x128xf32>
    %28 = tpu.matmul %27, %3, %cst_18 {dimension_numbers = #tpu.dot_dimension_numbers<[1], [0], [0], [1], [0, 0, 1, 1], [], []>} : vector<8x128xbf16>, vector<128x128xbf16>, vector<8x128xf32> -> vector<8x128xf32>
    %29 = arith.addf %26, %28 : vector<8x128xf32>
    %30 = math.tanh %29 : vector<8x128xf32>
    %31 = arith.truncf %30 : vector<8x128xf32> to vector<8x128xbf16>
    %c2_19 = arith.constant 2 : index
    %c0_20 = arith.constant 0 : index
    %c0_21 = arith.constant 0 : index
    %32 = vector.load %arg4[%c2_19, %c0_20, %c0_21] : memref<8x8x128xbf16, #tpu.memory_space<vmem>>, vector<1x8x128xbf16>
    %33 = vector.shape_cast %32 : vector<1x8x128xbf16> to vector<8x128xbf16>
    %34 = vector.shape_cast %31 : vector<8x128xbf16> to vector<1x8x128xbf16>
    tpu.vector_store %arg4[%c2_19, %c0_20, %c0_21], %34 {strides = array<i32>} : memref<8x8x128xbf16, #tpu.memory_space<vmem>>, vector<1x8x128xbf16>,
    %c3 = arith.constant 3 : index
    %c0_22 = arith.constant 0 : index
    %c0_23 = arith.constant 0 : index
    %35 = vector.load %arg2[%c3, %c0_22, %c0_23] : memref<8x8x128xf32, #tpu.memory_space<vmem>>, vector<1x8x128xf32>
    %36 = vector.shape_cast %35 : vector<1x8x128xf32> to vector<8x128xf32>
    %37 = arith.truncf %30 : vector<8x128xf32> to vector<8x128xbf16>
    %cst_24 = arith.constant dense<0.000000e+00> : vector<8x128xf32>
    %38 = tpu.matmul %37, %3, %cst_24 {dimension_numbers = #tpu.dot_dimension_numbers<[1], [0], [0], [1], [0, 0, 1, 1], [], []>} : vector<8x128xbf16>, vector<128x128xbf16>, vector<8x128xf32> -> vector<8x128xf32>
    %39 = arith.addf %36, %38 : vector<8x128xf32>
    %40 = math.tanh %39 : vector<8x128xf32>
    %41 = arith.truncf %40 : vector<8x128xf32> to vector<8x128xbf16>
    %c3_25 = arith.constant 3 : index
    %c0_26 = arith.constant 0 : index
    %c0_27 = arith.constant 0 : index
    %42 = vector.load %arg4[%c3_25, %c0_26, %c0_27] : memref<8x8x128xbf16, #tpu.memory_space<vmem>>, vector<1x8x128xbf16>
    %43 = vector.shape_cast %42 : vector<1x8x128xbf16> to vector<8x128xbf16>
    %44 = vector.shape_cast %41 : vector<8x128xbf16> to vector<1x8x128xbf16>
    tpu.vector_store %arg4[%c3_25, %c0_26, %c0_27], %44 {strides = array<i32>} : memref<8x8x128xbf16, #tpu.memory_space<vmem>>, vector<1x8x128xbf16>,
    %c4 = arith.constant 4 : index
    %c0_28 = arith.constant 0 : index
    %c0_29 = arith.constant 0 : index
    %45 = vector.load %arg2[%c4, %c0_28, %c0_29] : memref<8x8x128xf32, #tpu.memory_space<vmem>>, vector<1x8x128xf32>
    %46 = vector.shape_cast %45 : vector<1x8x128xf32> to vector<8x128xf32>
    %47 = arith.truncf %40 : vector<8x128xf32> to vector<8x128xbf16>
    %cst_30 = arith.constant dense<0.000000e+00> : vector<8x128xf32>
    %48 = tpu.matmul %47, %3, %cst_30 {dimension_numbers = #tpu.dot_dimension_numbers<[1], [0], [0], [1], [0, 0, 1, 1], [], []>} : vector<8x128xbf16>, vector<128x128xbf16>, vector<8x128xf32> -> vector<8x128xf32>
    %49 = arith.addf %46, %48 : vector<8x128xf32>
    %50 = math.tanh %49 : vector<8x128xf32>
    %51 = arith.truncf %50 : vector<8x128xf32> to vector<8x128xbf16>
    %c4_31 = arith.constant 4 : index
    %c0_32 = arith.constant 0 : index
    %c0_33 = arith.constant 0 : index
    %52 = vector.load %arg4[%c4_31, %c0_32, %c0_33] : memref<8x8x128xbf16, #tpu.memory_space<vmem>>, vector<1x8x128xbf16>
    %53 = vector.shape_cast %52 : vector<1x8x128xbf16> to vector<8x128xbf16>
    %54 = vector.shape_cast %51 : vector<8x128xbf16> to vector<1x8x128xbf16>
    tpu.vector_store %arg4[%c4_31, %c0_32, %c0_33], %54 {strides = array<i32>} : memref<8x8x128xbf16, #tpu.memory_space<vmem>>, vector<1x8x128xbf16>,
    %c5 = arith.constant 5 : index
    %c0_34 = arith.constant 0 : index
    %c0_35 = arith.constant 0 : index
    %55 = vector.load %arg2[%c5, %c0_34, %c0_35] : memref<8x8x128xf32, #tpu.memory_space<vmem>>, vector<1x8x128xf32>
    %56 = vector.shape_cast %55 : vector<1x8x128xf32> to vector<8x128xf32>
    %57 = arith.truncf %50 : vector<8x128xf32> to vector<8x128xbf16>
    %cst_36 = arith.constant dense<0.000000e+00> : vector<8x128xf32>
    %58 = tpu.matmul %57, %3, %cst_36 {dimension_numbers = #tpu.dot_dimension_numbers<[1], [0], [0], [1], [0, 0, 1, 1], [], []>} : vector<8x128xbf16>, vector<128x128xbf16>, vector<8x128xf32> -> vector<8x128xf32>
    %59 = arith.addf %56, %58 : vector<8x128xf32>
    %60 = math.tanh %59 : vector<8x128xf32>
    %61 = arith.truncf %60 : vector<8x128xf32> to vector<8x128xbf16>
    %c5_37 = arith.constant 5 : index
    %c0_38 = arith.constant 0 : index
    %c0_39 = arith.constant 0 : index
    %62 = vector.load %arg4[%c5_37, %c0_38, %c0_39] : memref<8x8x128xbf16, #tpu.memory_space<vmem>>, vector<1x8x128xbf16>
    %63 = vector.shape_cast %62 : vector<1x8x128xbf16> to vector<8x128xbf16>
    %64 = vector.shape_cast %61 : vector<8x128xbf16> to vector<1x8x128xbf16>
    tpu.vector_store %arg4[%c5_37, %c0_38, %c0_39], %64 {strides = array<i32>} : memref<8x8x128xbf16, #tpu.memory_space<vmem>>, vector<1x8x128xbf16>,
    %c6 = arith.constant 6 : index
    %c0_40 = arith.constant 0 : index
    %c0_41 = arith.constant 0 : index
    %65 = vector.load %arg2[%c6, %c0_40, %c0_41] : memref<8x8x128xf32, #tpu.memory_space<vmem>>, vector<1x8x128xf32>
    %66 = vector.shape_cast %65 : vector<1x8x128xf32> to vector<8x128xf32>
    %67 = arith.truncf %60 : vector<8x128xf32> to vector<8x128xbf16>
    %cst_42 = arith.constant dense<0.000000e+00> : vector<8x128xf32>
    %68 = tpu.matmul %67, %3, %cst_42 {dimension_numbers = #tpu.dot_dimension_numbers<[1], [0], [0], [1], [0, 0, 1, 1], [], []>} : vector<8x128xbf16>, vector<128x128xbf16>, vector<8x128xf32> -> vector<8x128xf32>
    %69 = arith.addf %66, %68 : vector<8x128xf32>
    %70 = math.tanh %69 : vector<8x128xf32>
    %71 = arith.truncf %70 : vector<8x128xf32> to vector<8x128xbf16>
    %c6_43 = arith.constant 6 : index
    %c0_44 = arith.constant 0 : index
    %c0_45 = arith.constant 0 : index
    %72 = vector.load %arg4[%c6_43, %c0_44, %c0_45] : memref<8x8x128xbf16, #tpu.memory_space<vmem>>, vector<1x8x128xbf16>
    %73 = vector.shape_cast %72 : vector<1x8x128xbf16> to vector<8x128xbf16>
    %74 = vector.shape_cast %71 : vector<8x128xbf16> to vector<1x8x128xbf16>
    tpu.vector_store %arg4[%c6_43, %c0_44, %c0_45], %74 {strides = array<i32>} : memref<8x8x128xbf16, #tpu.memory_space<vmem>>, vector<1x8x128xbf16>,
    %c7 = arith.constant 7 : index
    %c0_46 = arith.constant 0 : index
    %c0_47 = arith.constant 0 : index
    %75 = vector.load %arg2[%c7, %c0_46, %c0_47] : memref<8x8x128xf32, #tpu.memory_space<vmem>>, vector<1x8x128xf32>
    %76 = vector.shape_cast %75 : vector<1x8x128xf32> to vector<8x128xf32>
    %77 = arith.truncf %70 : vector<8x128xf32> to vector<8x128xbf16>
    %cst_48 = arith.constant dense<0.000000e+00> : vector<8x128xf32>
    %78 = tpu.matmul %77, %3, %cst_48 {dimension_numbers = #tpu.dot_dimension_numbers<[1], [0], [0], [1], [0, 0, 1, 1], [], []>} : vector<8x128xbf16>, vector<128x128xbf16>, vector<8x128xf32> -> vector<8x128xf32>
    %79 = arith.addf %76, %78 : vector<8x128xf32>
    %80 = math.tanh %79 : vector<8x128xf32>
    %81 = arith.truncf %80 : vector<8x128xf32> to vector<8x128xbf16>
    %c7_49 = arith.constant 7 : index
    %c0_50 = arith.constant 0 : index
    %c0_51 = arith.constant 0 : index
    %82 = vector.load %arg4[%c7_49, %c0_50, %c0_51] : memref<8x8x128xbf16, #tpu.memory_space<vmem>>, vector<1x8x128xbf16>
    %83 = vector.shape_cast %82 : vector<1x8x128xbf16> to vector<8x128xbf16>
    %84 = vector.shape_cast %81 : vector<8x128xbf16> to vector<1x8x128xbf16>
    tpu.vector_store %arg4[%c7_49, %c0_50, %c0_51], %84 {strides = array<i32>} : memref<8x8x128xbf16, #tpu.memory_space<vmem>>, vector<1x8x128xbf16>,
    %c0_52 = arith.constant 0 : index
    %c0_53 = arith.constant 0 : index
    %85 = vector.load %arg5[%c0_52, %c0_53] : memref<8x128xf32, #tpu.memory_space<vmem>>, vector<8x128xf32>
    tpu.vector_store %arg5[%c0_52, %c0_53], %80 {strides = array<i32>} : memref<8x128xf32, #tpu.memory_space<vmem>>, vector<8x128xf32>,
    return
  }
  func.func @transform_0(%arg0: i32, %arg1: i32) -> (i32, i32, i32) {
    %c0_i32 = arith.constant 0 : i32
    %c0_i32_0 = arith.constant 0 : i32
    return %arg1, %arg0, %c0_i32 : i32, i32, i32
  }
  func.func @transform_1(%arg0: i32, %arg1: i32) -> (i32, i32) {
    %c0_i32 = arith.constant 0 : i32
    %c0_i32_0 = arith.constant 0 : i32
    %c0_i32_1 = arith.constant 0 : i32
    return %c0_i32, %c0_i32_0 : i32, i32
  }
  func.func @transform_2(%arg0: i32, %arg1: i32) -> (i32, i32, i32) {
    %c0_i32 = arith.constant 0 : i32
    %c0_i32_0 = arith.constant 0 : i32
    return %arg1, %arg0, %c0_i32 : i32, i32, i32
  }
}

</mosaic_0001>

<llo_original>
// kernel: tpu_custom_call.1
$region0: #{tpu_custom_call.1}
  #allocation0 [shape = 'u32[]', space=smem, size = 0x4, offset = 0x4, fixed_abs, tag = 'smem constant byte address 0x4 - core index']
  #allocation1 [shape = 'u32[144,128]{1,0:T(1,128)}', space=vmem, size = 0x12000, scoped, tag = 'internal scratch']
  #allocation2 [shape = 'f32[8,128]{1,0:T(8,128)}', space=vmem, size = 0x1000, scoped, tag = 'scratch operand']
  %s0 = inlined_call_operand.hbm [shape: f32[8,8,128], index: 0, kind: input, shape index: {}]
  %s1 = inlined_call_operand.hbm [shape: bf16[128,128], index: 1, kind: input, shape index: {}]
  %s2 = inlined_call_operand.hbm [shape: bf16[8,8,128], index: 2, kind: output, shape index: {}]
  %s3 = sld [smem:[#allocation0]]
  $region30: #{tpu_custom_call.1} parent=0
    _
  %s5 = ssub.s32 1, %s3
  %s6 = scalar_select 0, %s5, %s3
  $region1: #{tpu_custom_call.1} parent=0
    #allocation3 [shape = 'u8[32768]{0}', space=vmem, size = 0x8000, scoped, tag = 'input window, operand 0, single buffered']
    #allocation4 [shape = 's32[1]{0}', space=sflag, size = 0x4, scoped, tag = 'scoped memory for tpu_custom_call.1']
    #allocation5 [shape = 's32[1]{0}', space=sflag, size = 0x4, scoped, tag = 'scoped memory for tpu_custom_call.1']
    #allocation6 [shape = 'u8[32768]{0}', space=vmem, size = 0x8000, scoped, tag = 'input window, operand 1, single buffered']
    #allocation7 [shape = 's32[1]{0}', space=sflag, size = 0x4, scoped, tag = 'scoped memory for tpu_custom_call.1']
    #allocation8 [shape = 'u8[16384]{0}', space=vmem, size = 0x4000, scoped, tag = 'output window, operand 0, single buffered']
    %7 = vsyncpa [#allocation4], 0
    %8 = vsyncpa [#allocation7], 0
    %9 = vsyncpa [#allocation5], 0
    // Predicated region
    $region2: #{tpu_custom_call.1} parent=1 // pred_check
      _
    $region3: #{tpu_custom_call.1} parent=1 // pred_check_branch
      %11 = sbr.rel (0) target = $region5
    $region4: #{tpu_custom_call.1} parent=1 // pred_region
      %s13 = ssub.s32 1024, 1024
      %14 = vsyncadd [#allocation4], %s13
      %s15 = sshll.u32 [#allocation3], 4
      %s16 = int_to_ptr.vmem [resolvable:$true] %s15
      %21 = dma.hbm_to_vmem [thread:$0]  %s0, 1024, %s16, [#allocation4], 128, 128, 8
    $region5: #{tpu_custom_call.1} parent=1 // pred_fallthru
      _
    // Predicated region
    $region6: #{tpu_custom_call.1} parent=1 // pred_check
      _
    $region7: #{tpu_custom_call.1} parent=1 // pred_check_branch
      %23 = sbr.rel (0) target = $region9
    $region8: #{tpu_custom_call.1} parent=1 // pred_region
      %s25 = ssub.s32 1024, 1024
      %26 = vsyncadd [#allocation7], %s25
      %s27 = sshll.u32 [#allocation6], 4
      %s28 = int_to_ptr.vmem [resolvable:$true] %s27
      %33 = dma.hbm_to_vmem [thread:$0]  %s1, 1024, %s28, [#allocation7], 64, 64, 4
    $region9: #{tpu_custom_call.1} parent=1 // pred_fallthru
      _
    // Predicated region
    $region10: #{tpu_custom_call.1} parent=1 // pred_check
      _
    $region11: #{tpu_custom_call.1} parent=1 // pred_check_branch
      %35 = sbr.rel (0) target = $region13
    $region12: #{tpu_custom_call.1} parent=1 // pred_region
      %36 = dma.done [#allocation4], 1024
    $region13: #{tpu_custom_call.1} parent=1 // pred_fallthru
      _
    // Predicated region
    $region14: #{tpu_custom_call.1} parent=1 // pred_check
      _
    $region15: #{tpu_custom_call.1} parent=1 // pred_check_branch
      %38 = sbr.rel (0) target = $region17
    $region16: #{tpu_custom_call.1} parent=1 // pred_region
      %39 = dma.done [#allocation7], 1024
    $region17: #{tpu_custom_call.1} parent=1 // pred_fallthru
      _
    %p41 = scmp.eq.s32.totalorder 0, 0
    // Predicated region
    $region18: #{tpu_custom_call.1} parent=1 // pred_check
      %p42 = pneg %p41
    $region19: #{tpu_custom_call.1} parent=1 // pred_check_branch
      %44 = sbr.rel (%p42) target = $region21
    $region20: #{tpu_custom_call.1} parent=1 // pred_region
      %45 = vst [vmem:[#allocation2] sm:$0xff] 0.0
    $region21: #{tpu_custom_call.1} parent=1 // pred_fallthru
      _
    %v46 = vld [vmem:[#allocation6] sm:$0xf]
    %v47 = vld [vmem:[#allocation6 + $0x4] sm:$0xf]
    %v48 = vld [vmem:[#allocation6 + $0x8] sm:$0xf]
    %v49 = vld [vmem:[#allocation6 + $0xc] sm:$0xf]
    %v50 = vld [vmem:[#allocation6 + $0x10] sm:$0xf]
    %v51 = vld [vmem:[#allocation6 + $0x14] sm:$0xf]
    %v52 = vld [vmem:[#allocation6 + $0x18] sm:$0xf]
    %v53 = vld [vmem:[#allocation6 + $0x1c] sm:$0xf]
    %v54 = vld [vmem:[#allocation6 + $0x20] sm:$0xf]
    %v55 = vld [vmem:[#allocation6 + $0x24] sm:$0xf]
    %v56 = vld [vmem:[#allocation6 + $0x28] sm:$0xf]
    %v57 = vld [vmem:[#allocation6 + $0x2c] sm:$0xf]
    %v58 = vld [vmem:[#allocation6 + $0x30] sm:$0xf]
    %v59 = vld [vmem:[#allocation6 + $0x34] sm:$0xf]
    %v60 = vld [vmem:[#allocation6 + $0x38] sm:$0xf]
    %v61 = vld [vmem:[#allocation6 + $0x3c] sm:$0xf]
    %v62 = vld [vmem:[#allocation2] sm:$0xff]
    %v63 = vld [vmem:[#allocation3] sm:$0xff]
    %v64 = vpack.c.bf16 %v62, %v62
    %v81 = vunpack.c.l.b16 %v46
    %v82 = vunpack.c.l.b16 %v47
    %v83 = vunpack.c.l.b16 %v48
    %v84 = vunpack.c.l.b16 %v49
    %v85 = vunpack.c.l.b16 %v50
    %v86 = vunpack.c.l.b16 %v51
    %v87 = vunpack.c.l.b16 %v52
    %v88 = vunpack.c.l.b16 %v53
    %v89 = vunpack.c.l.b16 %v54
    %v90 = vunpack.c.l.b16 %v55
    %v91 = vunpack.c.l.b16 %v56
    %v92 = vunpack.c.l.b16 %v57
    %v93 = vunpack.c.l.b16 %v58
    %v94 = vunpack.c.l.b16 %v59
    %v95 = vunpack.c.l.b16 %v60
    %v96 = vunpack.c.l.b16 %v61
    %v97 = vpack.c.b16 %v82, %v81
    %v98 = vpack.c.b16 %v84, %v83
    %v99 = vpack.c.b16 %v86, %v85
    %v100 = vpack.c.b16 %v88, %v87
    %v101 = vpack.c.b16 %v90, %v89
    %v102 = vpack.c.b16 %v92, %v91
    %v103 = vpack.c.b16 %v94, %v93
    %v104 = vpack.c.b16 %v96, %v95
    %113 = vmatprep.subr.bf16.mxu0 0
    %114 = vmatpush1.bf16.msra.mxu0 %v104
    %115 = vmatprep.subr.bf16.mxu0 0
    %116 = vmatpush1.bf16.msra.mxu0 %v103
    %117 = vmatprep.subr.bf16.mxu0 0
    %118 = vmatpush1.bf16.msra.mxu0 %v102
    %119 = vmatprep.subr.bf16.mxu0 0
    %120 = vmatpush1.bf16.msra.mxu0 %v101
    %121 = vmatprep.subr.bf16.mxu0 0
    %122 = vmatpush1.bf16.msra.mxu0 %v100
    %123 = vmatprep.subr.bf16.mxu0 0
    %124 = vmatpush1.bf16.msra.mxu0 %v99
    %125 = vmatprep.subr.bf16.mxu0 0
    %126 = vmatpush1.bf16.msra.mxu0 %v98
    %127 = vmatprep.subr.bf16.mxu0 0
    %128 = vmatpush1.bf16.msra.mxu0 %v97
    %129 = vmatprep.subr.bf16.mxu0 0
    %130 = vmatpush2.bf16.msra.mxu0 0
    %131 = vmatprep.subr.bf16.mxu0 0
    %132 = vmatpush2.bf16.msra.mxu0 0
    %133 = vmatprep.subr.bf16.mxu0 0
    %134 = vmatpush2.bf16.msra.mxu0 0
    %135 = vmatprep.subr.bf16.mxu0 0
    %136 = vmatpush2.bf16.msra.mxu0 0
    %137 = vmatprep.subr.bf16.mxu0 0
    %138 = vmatpush2.bf16.msra.mxu0 0
    %139 = vmatprep.subr.bf16.mxu0 0
    %140 = vmatpush2.bf16.msra.mxu0 0
    %141 = vmatprep.subr.bf16.mxu0 0
    %142 = vmatpush2.bf16.msra.mxu0 0
    %143 = vmatprep.subr.bf16.mxu0 0
    %144 = vmatpush2.bf16.msra.mxu0 0
    %145 = vmatprep.mubr.bf16.mxu0 0
    %146 = vmatmul.mubr.bf16.gmra.mxu0 %v64
    %v147 = vpop.f32.mrf.mxu0
    %v148 = vadd.f32 0.0, %v147
    %v149 = vpop.f32.mrf.mxu0
    %v150 = vpop.f32.mrf.mxu0
    %v151 = vpop.f32.mrf.mxu0
    %152 = vdwg.mxu0
    %v153 = vadd.f32 %v63, %v148
    %v154 = vtanh.pop %v153
    %v155 = vpack.c.bf16 %v154, %v154
    %156 = vst [vmem:[#allocation8] sm:$0xf] %v155
    %s157 = scalar_lea.vmem [#allocation3], 8
    %v158 = vld [vmem:[%s157] sm:$0xff]
    %159 = vmatprep.subr.bf16.mxu0 0
    %160 = vmatpush1.bf16.msra.mxu0 %v104
    %161 = vmatprep.subr.bf16.mxu0 0
    %162 = vmatpush1.bf16.msra.mxu0 %v103
    %163 = vmatprep.subr.bf16.mxu0 0
    %164 = vmatpush1.bf16.msra.mxu0 %v102
    %165 = vmatprep.subr.bf16.mxu0 0
    %166 = vmatpush1.bf16.msra.mxu0 %v101
    %167 = vmatprep.subr.bf16.mxu0 0
    %168 = vmatpush1.bf16.msra.mxu0 %v100
    %169 = vmatprep.subr.bf16.mxu0 0
    %170 = vmatpush1.bf16.msra.mxu0 %v99
    %171 = vmatprep.subr.bf16.mxu0 0
    %172 = vmatpush1.bf16.msra.mxu0 %v98
    %173 = vmatprep.subr.bf16.mxu0 0
    %174 = vmatpush1.bf16.msra.mxu0 %v97
    %175 = vmatprep.subr.bf16.mxu0 0
    %176 = vmatpush2.bf16.msra.mxu0 0
    %177 = vmatprep.subr.bf16.mxu0 0
    %178 = vmatpush2.bf16.msra.mxu0 0
    %179 = vmatprep.subr.bf16.mxu0 0
    %180 = vmatpush2.bf16.msra.mxu0 0
    %181 = vmatprep.subr.bf16.mxu0 0
    %182 = vmatpush2.bf16.msra.mxu0 0
    %183 = vmatprep.subr.bf16.mxu0 0
    %184 = vmatpush2.bf16.msra.mxu0 0
    %185 = vmatprep.subr.bf16.mxu0 0
    %186 = vmatpush2.bf16.msra.mxu0 0
    %187 = vmatprep.subr.bf16.mxu0 0
    %188 = vmatpush2.bf16.msra.mxu0 0
    %189 = vmatprep.subr.bf16.mxu0 0
    %190 = vmatpush2.bf16.msra.mxu0 0
    %191 = vmatprep.mubr.bf16.mxu0 0
    %192 = vmatmul.mubr.bf16.gmra.mxu0 %v155
    %v193 = vpop.f32.mrf.mxu0
    %v194 = vadd.f32 0.0, %v193
    %v195 = vpop.f32.mrf.mxu0
    %v196 = vpop.f32.mrf.mxu0
    %v197 = vpop.f32.mrf.mxu0
    %198 = vdwg.mxu0
    %v199 = vadd.f32 %v158, %v194
    %v200 = vtanh.pop %v199
    %v201 = vpack.c.bf16 %v200, %v200
    %s202 = scalar_lea.vmem [#allocation8], 4
    %203 = vst [vmem:[%s202] sm:$0xf] %v201
    %s204 = scalar_lea.vmem [#allocation3], 16
    %v205 = vld [vmem:[%s204] sm:$0xff]
    %206 = vmatprep.subr.bf16.mxu0 0
    %207 = vmatpush1.bf16.msra.mxu0 %v104
    %208 = vmatprep.subr.bf16.mxu0 0
    %209 = vmatpush1.bf16.msra.mxu0 %v103
    %210 = vmatprep.subr.bf16.mxu0 0
    %211 = vmatpush1.bf16.msra.mxu0 %v102
    %212 = vmatprep.subr.bf16.mxu0 0
    %213 = vmatpush1.bf16.msra.mxu0 %v101
    %214 = vmatprep.subr.bf16.mxu0 0
    %215 = vmatpush1.bf16.msra.mxu0 %v100
    %216 = vmatprep.subr.bf16.mxu0 0
    %217 = vmatpush1.bf16.msra.mxu0 %v99
    %218 = vmatprep.subr.bf16.mxu0 0
    %219 = vmatpush1.bf16.msra.mxu0 %v98
    %220 = vmatprep.subr.bf16.mxu0 0
    %221 = vmatpush1.bf16.msra.mxu0 %v97
    %222 = vmatprep.subr.bf16.mxu0 0
    %223 = vmatpush2.bf16.msra.mxu0 0
    %224 = vmatprep.subr.bf16.mxu0 0
    %225 = vmatpush2.bf16.msra.mxu0 0
    %226 = vmatprep.subr.bf16.mxu0 0
    %227 = vmatpush2.bf16.msra.mxu0 0
    %228 = vmatprep.subr.bf16.mxu0 0
    %229 = vmatpush2.bf16.msra.mxu0 0
    %230 = vmatprep.subr.bf16.mxu0 0
    %231 = vmatpush2.bf16.msra.mxu0 0
    %232 = vmatprep.subr.bf16.mxu0 0
    %233 = vmatpush2.bf16.msra.mxu0 0
    %234 = vmatprep.subr.bf16.mxu0 0
    %235 = vmatpush2.bf16.msra.mxu0 0
    %236 = vmatprep.subr.bf16.mxu0 0
    %237 = vmatpush2.bf16.msra.mxu0 0
    %238 = vmatprep.mubr.bf16.mxu0 0
    %239 = vmatmul.mubr.bf16.gmra.mxu0 %v201
    %v240 = vpop.f32.mrf.mxu0
    %v241 = vadd.f32 0.0, %v240
    %v242 = vpop.f32.mrf.mxu0
    %v243 = vpop.f32.mrf.mxu0
    %v244 = vpop.f32.mrf.mxu0
    %245 = vdwg.mxu0
    %v246 = vadd.f32 %v205, %v241
    %v247 = vtanh.pop %v246
    %v248 = vpack.c.bf16 %v247, %v247
    %s249 = scalar_lea.vmem [#allocation8], 8
    %250 = vst [vmem:[%s249] sm:$0xf] %v248
    %s251 = scalar_lea.vmem [#allocation3], 24
    %v252 = vld [vmem:[%s251] sm:$0xff]
    %253 = vmatprep.subr.bf16.mxu0 0
    %254 = vmatpush1.bf16.msra.mxu0 %v104
    %255 = vmatprep.subr.bf16.mxu0 0
    %256 = vmatpush1.bf16.msra.mxu0 %v103
    %257 = vmatprep.subr.bf16.mxu0 0
    %258 = vmatpush1.bf16.msra.mxu0 %v102
    %259 = vmatprep.subr.bf16.mxu0 0
    %260 = vmatpush1.bf16.msra.mxu0 %v101
    %261 = vmatprep.subr.bf16.mxu0 0
    %262 = vmatpush1.bf16.msra.mxu0 %v100
    %263 = vmatprep.subr.bf16.mxu0 0
    %264 = vmatpush1.bf16.msra.mxu0 %v99
    %265 = vmatprep.subr.bf16.mxu0 0
    %266 = vmatpush1.bf16.msra.mxu0 %v98
    %267 = vmatprep.subr.bf16.mxu0 0
    %268 = vmatpush1.bf16.msra.mxu0 %v97
    %269 = vmatprep.subr.bf16.mxu0 0
    %270 = vmatpush2.bf16.msra.mxu0 0
    %271 = vmatprep.subr.bf16.mxu0 0
    %272 = vmatpush2.bf16.msra.mxu0 0
    %273 = vmatprep.subr.bf16.mxu0 0
    %274 = vmatpush2.bf16.msra.mxu0 0
    %275 = vmatprep.subr.bf16.mxu0 0
    %276 = vmatpush2.bf16.msra.mxu0 0
    %277 = vmatprep.subr.bf16.mxu0 0
    %278 = vmatpush2.bf16.msra.mxu0 0
    %279 = vmatprep.subr.bf16.mxu0 0
    %280 = vmatpush2.bf16.msra.mxu0 0
    %281 = vmatprep.subr.bf16.mxu0 0
    %282 = vmatpush2.bf16.msra.mxu0 0
    %283 = vmatprep.subr.bf16.mxu0 0
    %284 = vmatpush2.bf16.msra.mxu0 0
    %285 = vmatprep.mubr.bf16.mxu0 0
    %286 = vmatmul.mubr.bf16.gmra.mxu0 %v248
    %v287 = vpop.f32.mrf.mxu0
    %v288 = vadd.f32 0.0, %v287
    %v289 = vpop.f32.mrf.mxu0
    %v290 = vpop.f32.mrf.mxu0
    %v291 = vpop.f32.mrf.mxu0
    %292 = vdwg.mxu0
    %v293 = vadd.f32 %v252, %v288
    %v294 = vtanh.pop %v293
    %v295 = vpack.c.bf16 %v294, %v294
    %s296 = scalar_lea.vmem [#allocation8], 12
    %297 = vst [vmem:[%s296] sm:$0xf] %v295
    %s298 = scalar_lea.vmem [#allocation3], 32
    %v299 = vld [vmem:[%s298] sm:$0xff]
    %300 = vmatprep.subr.bf16.mxu0 0
    %301 = vmatpush1.bf16.msra.mxu0 %v104
    %302 = vmatprep.subr.bf16.mxu0 0
    %303 = vmatpush1.bf16.msra.mxu0 %v103
    %304 = vmatprep.subr.bf16.mxu0 0
    %305 = vmatpush1.bf16.msra.mxu0 %v102
    %306 = vmatprep.subr.bf16.mxu0 0
    %307 = vmatpush1.bf16.msra.mxu0 %v101
    %308 = vmatprep.subr.bf16.mxu0 0
    %309 = vmatpush1.bf16.msra.mxu0 %v100
    %310 = vmatprep.subr.bf16.mxu0 0
    %311 = vmatpush1.bf16.msra.mxu0 %v99
    %312 = vmatprep.subr.bf16.mxu0 0
    %313 = vmatpush1.bf16.msra.mxu0 %v98
    %314 = vmatprep.subr.bf16.mxu0 0
    %315 = vmatpush1.bf16.msra.mxu0 %v97
    %316 = vmatprep.subr.bf16.mxu0 0
    %317 = vmatpush2.bf16.msra.mxu0 0
    %318 = vmatprep.subr.bf16.mxu0 0
    %319 = vmatpush2.bf16.msra.mxu0 0
    %320 = vmatprep.subr.bf16.mxu0 0
    %321 = vmatpush2.bf16.msra.mxu0 0
    %322 = vmatprep.subr.bf16.mxu0 0
    %323 = vmatpush2.bf16.msra.mxu0 0
    %324 = vmatprep.subr.bf16.mxu0 0
    %325 = vmatpush2.bf16.msra.mxu0 0
    %326 = vmatprep.subr.bf16.mxu0 0
    %327 = vmatpush2.bf16.msra.mxu0 0
    %328 = vmatprep.subr.bf16.mxu0 0
    %329 = vmatpush2.bf16.msra.mxu0 0
    %330 = vmatprep.subr.bf16.mxu0 0
    %331 = vmatpush2.bf16.msra.mxu0 0
    %332 = vmatprep.mubr.bf16.mxu0 0
    %333 = vmatmul.mubr.bf16.gmra.mxu0 %v295
    %v334 = vpop.f32.mrf.mxu0
    %v335 = vadd.f32 0.0, %v334
    %v336 = vpop.f32.mrf.mxu0
    %v337 = vpop.f32.mrf.mxu0
    %v338 = vpop.f32.mrf.mxu0
    %339 = vdwg.mxu0
    %v340 = vadd.f32 %v299, %v335
    %v341 = vtanh.pop %v340
    %v342 = vpack.c.bf16 %v341, %v341
    %s343 = scalar_lea.vmem [#allocation8], 16
    %344 = vst [vmem:[%s343] sm:$0xf] %v342
    %s345 = scalar_lea.vmem [#allocation3], 40
    %v346 = vld [vmem:[%s345] sm:$0xff]
    %347 = vmatprep.subr.bf16.mxu0 0
    %348 = vmatpush1.bf16.msra.mxu0 %v104
    %349 = vmatprep.subr.bf16.mxu0 0
    %350 = vmatpush1.bf16.msra.mxu0 %v103
    %351 = vmatprep.subr.bf16.mxu0 0
    %352 = vmatpush1.bf16.msra.mxu0 %v102
    %353 = vmatprep.subr.bf16.mxu0 0
    %354 = vmatpush1.bf16.msra.mxu0 %v101
    %355 = vmatprep.subr.bf16.mxu0 0
    %356 = vmatpush1.bf16.msra.mxu0 %v100
    %357 = vmatprep.subr.bf16.mxu0 0
    %358 = vmatpush1.bf16.msra.mxu0 %v99
    %359 = vmatprep.subr.bf16.mxu0 0
    %360 = vmatpush1.bf16.msra.mxu0 %v98
    %361 = vmatprep.subr.bf16.mxu0 0
    %362 = vmatpush1.bf16.msra.mxu0 %v97
    %363 = vmatprep.subr.bf16.mxu0 0
    %364 = vmatpush2.bf16.msra.mxu0 0
    %365 = vmatprep.subr.bf16.mxu0 0
    %366 = vmatpush2.bf16.msra.mxu0 0
    %367 = vmatprep.subr.bf16.mxu0 0
    %368 = vmatpush2.bf16.msra.mxu0 0
    %369 = vmatprep.subr.bf16.mxu0 0
    %370 = vmatpush2.bf16.msra.mxu0 0
    %371 = vmatprep.subr.bf16.mxu0 0
    %372 = vmatpush2.bf16.msra.mxu0 0
    %373 = vmatprep.subr.bf16.mxu0 0
    %374 = vmatpush2.bf16.msra.mxu0 0
    %375 = vmatprep.subr.bf16.mxu0 0
    %376 = vmatpush2.bf16.msra.mxu0 0
    %377 = vmatprep.subr.bf16.mxu0 0
    %378 = vmatpush2.bf16.msra.mxu0 0
    %379 = vmatprep.mubr.bf16.mxu0 0
    %380 = vmatmul.mubr.bf16.gmra.mxu0 %v342
    %v381 = vpop.f32.mrf.mxu0
    %v382 = vadd.f32 0.0, %v381
    %v383 = vpop.f32.mrf.mxu0
    %v384 = vpop.f32.mrf.mxu0
    %v385 = vpop.f32.mrf.mxu0
    %386 = vdwg.mxu0
    %v387 = vadd.f32 %v346, %v382
    %v388 = vtanh.pop %v387
    %v389 = vpack.c.bf16 %v388, %v388
    %s390 = scalar_lea.vmem [#allocation8], 20
    %391 = vst [vmem:[%s390] sm:$0xf] %v389
    %s392 = scalar_lea.vmem [#allocation3], 48
    %v393 = vld [vmem:[%s392] sm:$0xff]
    %394 = vmatprep.subr.bf16.mxu0 0
    %395 = vmatpush1.bf16.msra.mxu0 %v104
    %396 = vmatprep.subr.bf16.mxu0 0
    %397 = vmatpush1.bf16.msra.mxu0 %v103
    %398 = vmatprep.subr.bf16.mxu0 0
    %399 = vmatpush1.bf16.msra.mxu0 %v102
    %400 = vmatprep.subr.bf16.mxu0 0
    %401 = vmatpush1.bf16.msra.mxu0 %v101
    %402 = vmatprep.subr.bf16.mxu0 0
    %403 = vmatpush1.bf16.msra.mxu0 %v100
    %404 = vmatprep.subr.bf16.mxu0 0
    %405 = vmatpush1.bf16.msra.mxu0 %v99
    %406 = vmatprep.subr.bf16.mxu0 0
    %407 = vmatpush1.bf16.msra.mxu0 %v98
    %408 = vmatprep.subr.bf16.mxu0 0
    %409 = vmatpush1.bf16.msra.mxu0 %v97
    %410 = vmatprep.subr.bf16.mxu0 0
    %411 = vmatpush2.bf16.msra.mxu0 0
    %412 = vmatprep.subr.bf16.mxu0 0
    %413 = vmatpush2.bf16.msra.mxu0 0
    %414 = vmatprep.subr.bf16.mxu0 0
    %415 = vmatpush2.bf16.msra.mxu0 0
    %416 = vmatprep.subr.bf16.mxu0 0
    %417 = vmatpush2.bf16.msra.mxu0 0
    %418 = vmatprep.subr.bf16.mxu0 0
    %419 = vmatpush2.bf16.msra.mxu0 0
    %420 = vmatprep.subr.bf16.mxu0 0
    %421 = vmatpush2.bf16.msra.mxu0 0
    %422 = vmatprep.subr.bf16.mxu0 0
    %423 = vmatpush2.bf16.msra.mxu0 0
    %424 = vmatprep.subr.bf16.mxu0 0
    %425 = vmatpush2.bf16.msra.mxu0 0
    %426 = vmatprep.mubr.bf16.mxu0 0
    %427 = vmatmul.mubr.bf16.gmra.mxu0 %v389
    %v428 = vpop.f32.mrf.mxu0
    %v429 = vadd.f32 0.0, %v428
    %v430 = vpop.f32.mrf.mxu0
    %v431 = vpop.f32.mrf.mxu0
    %v432 = vpop.f32.mrf.mxu0
    %433 = vdwg.mxu0
    %v434 = vadd.f32 %v393, %v429
    %v435 = vtanh.pop %v434
    %v436 = vpack.c.bf16 %v435, %v435
    %s437 = scalar_lea.vmem [#allocation8], 24
    %438 = vst [vmem:[%s437] sm:$0xf] %v436
    %s439 = scalar_lea.vmem [#allocation3], 56
    %v440 = vld [vmem:[%s439] sm:$0xff]
    %441 = vmatprep.subr.bf16.mxu0 0
    %442 = vmatpush1.bf16.msra.mxu0 %v104
    %443 = vmatprep.subr.bf16.mxu0 0
    %444 = vmatpush1.bf16.msra.mxu0 %v103
    %445 = vmatprep.subr.bf16.mxu0 0
    %446 = vmatpush1.bf16.msra.mxu0 %v102
    %447 = vmatprep.subr.bf16.mxu0 0
    %448 = vmatpush1.bf16.msra.mxu0 %v101
    %449 = vmatprep.subr.bf16.mxu0 0
    %450 = vmatpush1.bf16.msra.mxu0 %v100
    %451 = vmatprep.subr.bf16.mxu0 0
    %452 = vmatpush1.bf16.msra.mxu0 %v99
    %453 = vmatprep.subr.bf16.mxu0 0
    %454 = vmatpush1.bf16.msra.mxu0 %v98
    %455 = vmatprep.subr.bf16.mxu0 0
    %456 = vmatpush1.bf16.msra.mxu0 %v97
    %457 = vmatprep.subr.bf16.mxu0 0
    %458 = vmatpush2.bf16.msra.mxu0 0
    %459 = vmatprep.subr.bf16.mxu0 0
    %460 = vmatpush2.bf16.msra.mxu0 0
    %461 = vmatprep.subr.bf16.mxu0 0
    %462 = vmatpush2.bf16.msra.mxu0 0
    %463 = vmatprep.subr.bf16.mxu0 0
    %464 = vmatpush2.bf16.msra.mxu0 0
    %465 = vmatprep.subr.bf16.mxu0 0
    %466 = vmatpush2.bf16.msra.mxu0 0
    %467 = vmatprep.subr.bf16.mxu0 0
    %468 = vmatpush2.bf16.msra.mxu0 0
    %469 = vmatprep.subr.bf16.mxu0 0
    %470 = vmatpush2.bf16.msra.mxu0 0
    %471 = vmatprep.subr.bf16.mxu0 0
    %472 = vmatpush2.bf16.msra.mxu0 0
    %473 = vmatprep.mubr.bf16.mxu0 0
    %474 = vmatmul.mubr.bf16.gmra.mxu0 %v436
    %v475 = vpop.f32.mrf.mxu0
    %v476 = vadd.f32 0.0, %v475
    %v477 = vpop.f32.mrf.mxu0
    %v478 = vpop.f32.mrf.mxu0
    %v479 = vpop.f32.mrf.mxu0
    %480 = vdwg.mxu0
    %v481 = vadd.f32 %v440, %v476
    %v482 = vtanh.pop %v481
    %v483 = vpack.c.bf16 %v482, %v482
    %s484 = scalar_lea.vmem [#allocation8], 28
    %485 = vst [vmem:[%s484] sm:$0xf] %v483
    %486 = vst [vmem:[#allocation2] sm:$0xff] %v482
    // Predicated region
    $region22: #{tpu_custom_call.1} parent=1 // pred_check
      _
    $region23: #{tpu_custom_call.1} parent=1 // pred_check_branch
      %488 = sbr.rel (0) target = $region25
    $region24: #{tpu_custom_call.1} parent=1 // pred_region
      %s490 = ssub.s32 512, 512
      %491 = vsyncadd [#allocation5], %s490
      %s492 = sshll.u32 [#allocation8], 4
      %s493 = int_to_ptr.vmem [resolvable:$true] %s492
      %498 = dma.vmem_to_hbm [thread:$0]  %s493, 512, %s2, [#allocation5], 64, 64, 4
    $region25: #{tpu_custom_call.1} parent=1 // pred_fallthru
      _
    // Predicated region
    $region26: #{tpu_custom_call.1} parent=1 // pred_check
      _
    $region27: #{tpu_custom_call.1} parent=1 // pred_check_branch
      %500 = sbr.rel (0) target = $region29
    $region28: #{tpu_custom_call.1} parent=1 // pred_region
      %501 = dma.done [#allocation5], 512
    $region29: #{tpu_custom_call.1} parent=1 // pred_fallthru
      _
    %502 = vsyncpa [#allocation4], 1
    %503 = vsyncpa [#allocation7], 1
    %504 = vsyncpa [#allocation5], 1

</llo_original>
